<compile_context>
chip_gen: v7x
topology: tpu7x:2x2x1
jax: 0.10.0
libtpu: 0.0.40
codegen_flags: <defaults>
</compile_context>

<pallas_src>
import functools
import math

import jax
import jax.numpy as jnp
from jax.experimental import pallas as pl
from jax.experimental.pallas import tpu as pltpu

_LANE = 128


# --------------------------------------------------------------------------
# VMEM budgeting
# --------------------------------------------------------------------------
def _vmem_budget():
    """Generation-aware (blocks + f32 temporaries) budget and scoped limit."""
    try:
        cap = int(pltpu.get_tpu_info().vmem_capacity_bytes)
    except Exception:
        cap = 64 * 1024 * 1024        # conservative (v7x-class per-core VMEM)
    budget = int(cap * 0.55)          # what tiles are sized against
    vmem_limit = int(cap * 0.75)      # scoped-VMEM limit handed to Mosaic
    return budget, vmem_limit


def _pick_tile_f(feat, per_col_bytes, budget):
    """Largest lane-multiple feature tile fitting `budget` bytes.

    Prefers a tile that divides ceil(F/128) groups evenly; otherwise accepts a
    partial edge block (safe: all math here is per-column)."""
    max_d = max(1, (budget // max(per_col_bytes, 1)) // _LANE)
    k = -(-feat // _LANE)
    if max_d >= k:
        return feat                    # whole feature axis in one block
    d = max_d
    while d > 1 and k % d != 0:
        d -= 1
    if d * 2 < max_d:                  # divisor too small -> accept ragged edge
        d = max_d
    return d * _LANE


# --------------------------------------------------------------------------
# Kernels
# --------------------------------------------------------------------------
def _ema_update_single_kernel(count_ref, value_ref, mu_ref, m2_ref,
                              out_ref, new_mu_ref, new_m2_ref,
                              *, gamma, eps, b_count, normalize):
    """Eval mode, whole batch resident: stats update + output in one pass."""
    v = value_ref[...].astype(jnp.float32)        # (B, tile_f)
    mu = mu_ref[...]                              # (1, tile_f) f32
    m2 = m2_ref[...]

    count_old = count_ref[0] * gamma              # scalar (SMEM)
    n = count_old + b_count

    b_mean = jnp.mean(v, axis=0, keepdims=True)
    b_m2 = jnp.sum((v - b_mean) ** 2, axis=0, keepdims=True)
    delta = b_mean - mu
    mu_new = mu + delta * (b_count / n)
    m2_new = m2 + b_m2 + delta * delta * (count_old * (b_count / n))

    new_mu_ref[...] = mu_new
    new_m2_ref[...] = m2_new

    if normalize:
        # Static branch: n = gamma*count + B is known > 2 on the host.
        std = jnp.sqrt(m2_new * (1.0 / n))
        corr = mu_new / (std + eps)               # exact divide (one small row)
        # NOTE: reproduces the original expression: value - mean/(stdev+eps).
        out_ref[...] = (v - corr).astype(out_ref.dtype)
    else:
        out_ref[...] = value_ref[...]


def _ema_update_chunked_kernel(count_ref, value_ref, mu_ref, m2_ref,
                               out_ref, new_mu_ref, new_m2_ref,
                               s_acc, q_acc, mu_s, m2_s, corr_s,
                               *, gamma, eps, b_count, nb):
    """Eval mode, large batch: phase 0 (s in [0, nb)) accumulates per-column
    sums of d = v - mu and d^2 over batch chunks, finalizes the Welford update
    at s == nb-1; phase 1 (s in [nb, 2nb)) streams the batch again to emit the
    normalized output. Only used when B is large (so count > 2 always)."""
    s = pl.program_id(1)

    @pl.when(s == 0)
    def _():
        s_acc[...] = jnp.zeros_like(s_acc)
        q_acc[...] = jnp.zeros_like(q_acc)

    @pl.when(s < nb)
    def _():
        d = value_ref[...].astype(jnp.float32) - mu_ref[...]
        s_acc[...] = s_acc[...] + jnp.sum(d, axis=0, keepdims=True)
        q_acc[...] = q_acc[...] + jnp.sum(d * d, axis=0, keepdims=True)

    @pl.when(s == nb - 1)
    def _():
        count_old = count_ref[0] * gamma
        n = count_old + b_count
        delta = s_acc[...] * (1.0 / b_count)          # = b_mean - mu
        b_m2 = q_acc[...] - s_acc[...] * delta        # sum (v - b_mean)^2
        mu_new = mu_ref[...] + delta * (b_count / n)
        m2_new = m2_ref[...] + b_m2 + delta * delta * (count_old * (b_count / n))
        mu_s[...] = mu_new
        m2_s[...] = m2_new
        std = jnp.sqrt(m2_new * (1.0 / n))
        corr_s[...] = mu_new / (std + eps)

    @pl.when(s >= nb)
    def _():
        out_ref[...] = (value_ref[...].astype(jnp.float32)
                        - corr_s[...]).astype(out_ref.dtype)
        # Written on every phase-1 step (cheap row copy); the HBM writeback of
        # these (1, tile_f) blocks still happens only once per feature tile.
        new_mu_ref[...] = mu_s[...]
        new_m2_ref[...] = m2_s[...]


def _normalize_only_kernel(count_ref, value_ref, mu_ref, m2_ref, out_ref,
                           *, eps):
    """Train mode with count > 2: pure elementwise normalization."""
    inv_count = 1.0 / count_ref[0]
    std = jnp.sqrt(m2_ref[...] * inv_count)
    corr = mu_ref[...] / (std + eps)
    out_ref[...] = (value_ref[...].astype(jnp.float32) - corr).astype(out_ref.dtype)


# --------------------------------------------------------------------------
# Wrapper
# --------------------------------------------------------------------------
def ema_normalizer_forward(value, mu, m2, count, *, gamma, epsilon=1e-5,
                           training=False, max_batch_chunk=None):
    """Functional EMANormalizer forward.

    Args:
      value: (B, *shape) input (any float dtype; bf16 stays bf16 end-to-end).
      mu, m2: (*shape,) running Welford statistics (kept in f32).
      count: python float, running (decayed) sample count.
      max_batch_chunk: optional cap on batch rows per block (testing/tuning).
    Returns:
      out (B, *shape) in value.dtype, new_mu (f32), new_m2 (f32), new_count.
    """
    B = value.shape[0]
    feat_shape = value.shape[1:]
    F = math.prod(feat_shape)
    out_dtype = value.dtype
    itemsize = jnp.dtype(out_dtype).itemsize

    gamma = float(gamma)
    eps = float(epsilon)
    count = float(count)

    budget, vmem_limit = _vmem_budget()
    # bytes per feature column for `rows` batch rows in the block:
    #   2x double-buffered value in + out, ~8 B of f32 temporaries per row,
    #   plus the handful of (1, tile_f) f32 stats / scratch rows.
    per_col = lambda rows: rows * (4 * itemsize + 8) + 64
    tgt = min(-(-F // _LANE) * _LANE, 512)    # want >= 512-lane tiles

    v2d = value.reshape(B, F)
    mu2d = mu.reshape(1, F).astype(jnp.float32)
    m2_2d = m2.reshape(1, F).astype(jnp.float32)
    count_arr = jnp.asarray([count], dtype=jnp.float32)

    # ---------------- training mode: no state update ----------------------
    if training:
        if count <= 2.0:
            # Original module returns the input unchanged; no kernel needed.
            return value, mu, m2, count
        tb_cap = max(8, ((budget // tgt) - 64) // (4 * itemsize + 8))
        if max_batch_chunk is not None:
            tb_cap = min(tb_cap, max_batch_chunk)
        if B <= tb_cap:
            tb, nb = B, 1
        else:
            tb = max(8, (tb_cap // 8) * 8)    # ragged last chunk is fine here
            nb = -(-B // tb)
        tile_f = _pick_tile_f(F, per_col(tb), budget)
        num_f = -(-F // tile_f)

        out2d = pl.pallas_call(
            functools.partial(_normalize_only_kernel, eps=eps),
            out_shape=jax.ShapeDtypeStruct((B, F), out_dtype),
            grid=(num_f, nb),
            in_specs=[
                pl.BlockSpec(memory_space=pltpu.MemorySpace.SMEM),
                pl.BlockSpec((tb, tile_f), lambda j, bi: (bi, j)),
                pl.BlockSpec((1, tile_f), lambda j, bi: (0, j)),
                pl.BlockSpec((1, tile_f), lambda j, bi: (0, j)),
            ],
            out_specs=pl.BlockSpec((tb, tile_f), lambda j, bi: (bi, j)),
            compiler_params=pltpu.CompilerParams(
                dimension_semantics=("parallel", "parallel"),
                vmem_limit_bytes=vmem_limit),
            cost_estimate=pl.CostEstimate(
                flops=int(4 * B * F), transcendentals=int(F),
                bytes_accessed=int(2 * B * F * itemsize + 8 * F)),
        )(count_arr, v2d, mu2d, m2_2d)
        return out2d.reshape(value.shape), mu, m2, count

    # ---------------- eval mode: state update + (static) normalize --------
    count_old = count * gamma
    n = count_old + B
    new_count = n
    normalize = n > 2.0                      # static host-side decision

    # Choose between single-pass (whole batch in the block) and batch-chunked
    # two-phase plans.
    single_ok = per_col(B) * tgt <= budget
    if max_batch_chunk is not None:
        single_ok = single_ok and B <= max_batch_chunk
    tb = nb = None
    if not single_ok:
        tb_cap = max(1, ((budget // tgt) - 64) // (4 * itemsize + 8))
        if max_batch_chunk is not None:
            tb_cap = min(tb_cap, max_batch_chunk)
        best = 0
        d = (tb_cap // 8) * 8
        while d >= 8:                         # largest multiple-of-8 divisor of B
            if B % d == 0:
                best = d
                break
            d -= 8
        if best and best < B:
            tb, nb = best, B // best
        # else: no clean batch chunking (e.g. prime-ish B) -> single pass.
        # TODO(synk): support ragged batch chunks via an in-kernel row mask.

    out_shapes = (jax.ShapeDtypeStruct((B, F), out_dtype),
                  jax.ShapeDtypeStruct((1, F), jnp.float32),
                  jax.ShapeDtypeStruct((1, F), jnp.float32))

    if tb is None:
        # ------ single pass: stats + output per feature tile ------
        tile_f = _pick_tile_f(F, per_col(B), budget)
        num_f = -(-F // tile_f)
        out2d, new_mu2d, new_m2_2d = pl.pallas_call(
            functools.partial(_ema_update_single_kernel, gamma=gamma, eps=eps,
                              b_count=float(B), normalize=normalize),
            out_shape=out_shapes,
            grid=(num_f,),
            in_specs=[
                pl.BlockSpec(memory_space=pltpu.MemorySpace.SMEM),
                pl.BlockSpec((B, tile_f), lambda j: (0, j)),
                pl.BlockSpec((1, tile_f), lambda j: (0, j)),
                pl.BlockSpec((1, tile_f), lambda j: (0, j)),
            ],
            out_specs=(
                pl.BlockSpec((B, tile_f), lambda j: (0, j)),
                pl.BlockSpec((1, tile_f), lambda j: (0, j)),
                pl.BlockSpec((1, tile_f), lambda j: (0, j)),
            ),
            # mu -> new_mu, m2 -> new_m2 (true in-place when donated under jit).
            input_output_aliases={2: 1, 3: 2},
            compiler_params=pltpu.CompilerParams(
                dimension_semantics=("parallel",),
                vmem_limit_bytes=vmem_limit),
            cost_estimate=pl.CostEstimate(
                flops=int(8 * B * F), transcendentals=int(F),
                bytes_accessed=int(2 * B * F * itemsize + 16 * F + 4)),
        )(count_arr, v2d, mu2d, m2_2d)
    else:
        # ------ two-phase batch-chunked plan for large B ------
        tile_f = _pick_tile_f(F, per_col(tb), budget)
        num_f = -(-F // tile_f)
        out2d, new_mu2d, new_m2_2d = pl.pallas_call(
            functools.partial(_ema_update_chunked_kernel, gamma=gamma, eps=eps,
                              b_count=float(B), nb=nb),
            out_shape=out_shapes,
            grid=(num_f, 2 * nb),
            in_specs=[
                pl.BlockSpec(memory_space=pltpu.MemorySpace.SMEM),
                pl.BlockSpec((tb, tile_f), lambda j, s: (s % nb, j)),
                pl.BlockSpec((1, tile_f), lambda j, s: (0, j)),
                pl.BlockSpec((1, tile_f), lambda j, s: (0, j)),
            ],
            out_specs=(
                # Held at block 0 during phase 0 so no garbage writeback occurs.
                pl.BlockSpec((tb, tile_f),
                             lambda j, s: (jnp.maximum(s - nb, 0), j)),
                pl.BlockSpec((1, tile_f), lambda j, s: (0, j)),
                pl.BlockSpec((1, tile_f), lambda j, s: (0, j)),
            ),
            scratch_shapes=[pltpu.VMEM((1, tile_f), jnp.float32)] * 5,
            compiler_params=pltpu.CompilerParams(
                dimension_semantics=("parallel", "arbitrary"),
                vmem_limit_bytes=vmem_limit),
            cost_estimate=pl.CostEstimate(
                flops=int(8 * B * F), transcendentals=int(F),
                bytes_accessed=int(3 * B * F * itemsize + 16 * F + 4)),
        )(count_arr, v2d, mu2d, m2_2d)

    return (out2d.reshape(value.shape),
            new_mu2d.reshape(feat_shape),
            new_m2_2d.reshape(feat_shape),
            new_count)


# --------------------------------------------------------------------------
# Pure-JAX reference mirroring the PyTorch module.
# --------------------------------------------------------------------------
def _reference_forward(value, mu, m2, count, gamma, eps, training):
    B = value.shape[0]
    v = value.reshape((B,) + mu.shape)
    if not training:
        count = count * gamma
        b_mean = jnp.mean(v, axis=0)
        b_m2 = jnp.sum((v - b_mean) ** 2, axis=0)
        n = count + B
        delta = b_mean - mu
        m2 = m2 + b_m2 + delta ** 2 * (count * B / n)
        mu = mu + delta * (B / n)
        count = n
    if count > 2:
        std = jnp.sqrt(m2 / count)
        out = value - mu / (std + eps)
    else:
        out = value
    return out, mu, m2, count


if __name__ == "__main__":
    # Module config: shape = (C, H, W), gamma, epsilon.
    C, H, W = 4, 16, 16
    gamma = 0.99
    epsilon = 1e-5

    key = jax.random.PRNGKey(0)
    k1, k2 = jax.random.split(key)

    # State from __init__: count = 0, mu = zeros, m2 = zeros.
    mu0 = jnp.zeros((C, H, W), jnp.float32)
    m2_0 = jnp.zeros((C, H, W), jnp.float32)
    count0 = 0.0

    # ---- 1) eval mode, first update (single-pass path) -------------------
    B = 4
    value = jax.random.normal(k1, (B, C, H, W), dtype=jnp.float32) * 2.0 + 1.0
    out, new_mu, new_m2, new_count = ema_normalizer_forward(
        value, mu0, m2_0, count0, gamma=gamma, epsilon=epsilon, training=False)
    out = jax.block_until_ready(out)

    ref_out, ref_mu, ref_m2, ref_count = _reference_forward(
        value, mu0, m2_0, count0, gamma, epsilon, False)
    assert jnp.allclose(out, ref_out, atol=1e-4, rtol=1e-4)
    assert jnp.allclose(new_mu, ref_mu, atol=1e-5, rtol=1e-5)
    assert jnp.allclose(new_m2, ref_m2, atol=1e-4, rtol=1e-4)
    assert abs(new_count - float(ref_count)) < 1e-5

    # ---- 2) eval mode, second update, batch-chunked path (forced) --------
    B2 = 16
    value2 = jax.random.normal(k2, (B2, C, H, W), dtype=jnp.float32) * 2.0 + 1.0
    out2, mu2, m2_2, count2 = ema_normalizer_forward(
        value2, ref_mu, ref_m2, float(ref_count),
        gamma=gamma, epsilon=epsilon, training=False, max_batch_chunk=8)
    out2 = jax.block_until_ready(out2)

    ref2_out, ref2_mu, ref2_m2, ref2_count = _reference_forward(
        value2, ref_mu, ref_m2, float(ref_count), gamma, epsilon, False)
    assert jnp.allclose(out2, ref2_out, atol=1e-4, rtol=1e-4)
    assert jnp.allclose(mu2, ref2_mu, atol=1e-4, rtol=1e-4)
    assert jnp.allclose(m2_2, ref2_m2, atol=1e-3, rtol=1e-4)
    assert abs(count2 - float(ref2_count)) < 1e-4

    # ---- 3) train mode with count > 2 (normalize-only kernel) ------------
    out3, mu3, m2_3, count3 = ema_normalizer_forward(
        value2, ref_mu, ref_m2, float(ref_count),
        gamma=gamma, epsilon=epsilon, training=True)
    out3 = jax.block_until_ready(out3)
    ref3_out, _, _, _ = _reference_forward(
        value2, ref_mu, ref_m2, float(ref_count), gamma, epsilon, True)
    assert jnp.allclose(out3, ref3_out, atol=1e-4, rtol=1e-4)
    assert jnp.allclose(mu3, ref_mu) and jnp.allclose(m2_3, ref_m2)
    assert count3 == float(ref_count)

    # ---- 4) train mode with count <= 2 (identity, no kernel) -------------
    out4, _, _, count4 = ema_normalizer_forward(
        value, mu0, m2_0, 0.0, gamma=gamma, epsilon=epsilon, training=True)
    assert jnp.array_equal(out4, value)
    assert count4 == 0.0

    print("KERNEL_OK")
</pallas_src>

<mosaic_0001>
module attributes {stable_mosaic.version = 11 : i64} {
  func.func @_ema_update_single_kernel(%arg0: i32, %arg1: memref<1xf32, #tpu.memory_space<smem>>, %arg2: memref<4x1024xf32, #tpu.memory_space<vmem>>, %arg3: memref<1x1024xf32, #tpu.memory_space<vmem>>, %arg4: memref<1x1024xf32, #tpu.memory_space<vmem>>, %arg5: memref<4x1024xf32, #tpu.memory_space<vmem>>, %arg6: memref<1x1024xf32, #tpu.memory_space<vmem>>, %arg7: memref<1x1024xf32, #tpu.memory_space<vmem>>) attributes {dimension_semantics = [#tpu.dimension_semantics<parallel>], iteration_bounds = array<i64: 1>, scalar_prefetch = 0 : i64, scratch_operands = 0 : i64, tpu.core_type = #tpu.core_type<tc>, window_params = [{transform_indices = @transform_0, window_bounds = array<i64: 1>}, {transform_indices = @transform_1, window_bounds = array<i64: 4, 1024>}, {transform_indices = @transform_2, window_bounds = array<i64: 1, 1024>}, {transform_indices = @transform_3, window_bounds = array<i64: 1, 1024>}, {transform_indices = @transform_4, window_bounds = array<i64: 4, 1024>}, {transform_indices = @transform_5, window_bounds = array<i64: 1, 1024>}, {transform_indices = @transform_6, window_bounds = array<i64: 1, 1024>}]} {
    %c0 = arith.constant 0 : index
    %c0_0 = arith.constant 0 : index
    %0 = vector.load %arg2[%c0, %c0_0] : memref<4x1024xf32, #tpu.memory_space<vmem>>, vector<4x1024xf32>
    %c0_1 = arith.constant 0 : index
    %c0_2 = arith.constant 0 : index
    %1 = vector.load %arg3[%c0_1, %c0_2] : memref<1x1024xf32, #tpu.memory_space<vmem>>, vector<1x1024xf32>
    %c0_3 = arith.constant 0 : index
    %c0_4 = arith.constant 0 : index
    %2 = vector.load %arg4[%c0_3, %c0_4] : memref<1x1024xf32, #tpu.memory_space<vmem>>, vector<1x1024xf32>
    %c0_5 = arith.constant 0 : index
    %3 = memref.load %arg1[%c0_5] : memref<1xf32, #tpu.memory_space<smem>>
    %cst = arith.constant 9.900000e-01 : f32
    %4 = arith.mulf %3, %cst : f32
    %cst_6 = arith.constant 4.000000e+00 : f32
    %5 = arith.addf %4, %cst_6 : f32
    %cst_7 = arith.constant dense<0.000000e+00> : vector<1024xf32>
    %6 = vector.multi_reduction <add>, %0, %cst_7 [0] : vector<4x1024xf32> to vector<1024xf32>
    %7 = vector.shape_cast %6 : vector<1024xf32> to vector<1x1024xf32>
    %cst_8 = arith.constant 4.000000e+00 : f32
    %8 = vector.broadcast %cst_8 : f32 to vector<1x1024xf32>
    %9 = arith.divf %7, %8 : vector<1x1024xf32>
    %10 = vector.broadcast %9 : vector<1x1024xf32> to vector<4x1024xf32>
    %11 = arith.subf %0, %10 : vector<4x1024xf32>
    %12 = arith.mulf %11, %11 : vector<4x1024xf32>
    %cst_9 = arith.constant dense<0.000000e+00> : vector<1024xf32>
    %13 = vector.multi_reduction <add>, %12, %cst_9 [0] : vector<4x1024xf32> to vector<1024xf32>
    %14 = vector.shape_cast %13 : vector<1024xf32> to vector<1x1024xf32>
    %15 = arith.subf %9, %1 : vector<1x1024xf32>
    %cst_10 = arith.constant 4.000000e+00 : f32
    %16 = arith.divf %cst_10, %5 : f32
    %17 = vector.broadcast %16 : f32 to vector<1x1024xf32>
    %18 = arith.mulf %15, %17 : vector<1x1024xf32>
    %19 = arith.addf %1, %18 : vector<1x1024xf32>
    %20 = arith.addf %2, %14 : vector<1x1024xf32>
    %21 = arith.mulf %15, %15 : vector<1x1024xf32>
    %cst_11 = arith.constant 4.000000e+00 : f32
    %22 = arith.divf %cst_11, %5 : f32
    %23 = arith.mulf %4, %22 : f32
    %24 = vector.broadcast %23 : f32 to vector<1x1024xf32>
    %25 = arith.mulf %21, %24 : vector<1x1024xf32>
    %26 = arith.addf %20, %25 : vector<1x1024xf32>
    %c0_12 = arith.constant 0 : index
    %c0_13 = arith.constant 0 : index
    %27 = vector.load %arg6[%c0_12, %c0_13] : memref<1x1024xf32, #tpu.memory_space<vmem>>, vector<1x1024xf32>
    tpu.vector_store %arg6[%c0_12, %c0_13], %19 {strides = array<i32>} : memref<1x1024xf32, #tpu.memory_space<vmem>>, vector<1x1024xf32>,
    %c0_14 = arith.constant 0 : index
    %c0_15 = arith.constant 0 : index
    %28 = vector.load %arg7[%c0_14, %c0_15] : memref<1x1024xf32, #tpu.memory_space<vmem>>, vector<1x1024xf32>
    tpu.vector_store %arg7[%c0_14, %c0_15], %26 {strides = array<i32>} : memref<1x1024xf32, #tpu.memory_space<vmem>>, vector<1x1024xf32>,
    %cst_16 = arith.constant 1.000000e+00 : f32
    %29 = arith.divf %cst_16, %5 : f32
    %30 = vector.broadcast %29 : f32 to vector<1x1024xf32>
    %31 = arith.mulf %26, %30 : vector<1x1024xf32>
    %32 = math.sqrt %31 : vector<1x1024xf32>
    %cst_17 = arith.constant 9.99999974E-6 : f32
    %33 = vector.broadcast %cst_17 : f32 to vector<1x1024xf32>
    %34 = arith.addf %32, %33 : vector<1x1024xf32>
    %35 = arith.divf %19, %34 : vector<1x1024xf32>
    %36 = vector.broadcast %35 : vector<1x1024xf32> to vector<4x1024xf32>
    %37 = arith.subf %0, %36 : vector<4x1024xf32>
    %c0_18 = arith.constant 0 : index
    %c0_19 = arith.constant 0 : index
    %38 = vector.load %arg5[%c0_18, %c0_19] : memref<4x1024xf32, #tpu.memory_space<vmem>>, vector<4x1024xf32>
    tpu.vector_store %arg5[%c0_18, %c0_19], %37 {strides = array<i32>} : memref<4x1024xf32, #tpu.memory_space<vmem>>, vector<4x1024xf32>,
    return
  }
  func.func @transform_0(%arg0: i32) -> i32 {
    %c0_i32 = arith.constant 0 : i32
    %c0_i32_0 = arith.constant 0 : i32
    return %c0_i32 : i32
  }
  func.func @transform_1(%arg0: i32) -> (i32, i32) {
    %c0_i32 = arith.constant 0 : i32
    %c0_i32_0 = arith.constant 0 : i32
    return %c0_i32, %arg0 : i32, i32
  }
  func.func @transform_2(%arg0: i32) -> (i32, i32) {
    %c0_i32 = arith.constant 0 : i32
    %c0_i32_0 = arith.constant 0 : i32
    return %c0_i32, %arg0 : i32, i32
  }
  func.func @transform_3(%arg0: i32) -> (i32, i32) {
    %c0_i32 = arith.constant 0 : i32
    %c0_i32_0 = arith.constant 0 : i32
    return %c0_i32, %arg0 : i32, i32
  }
  func.func @transform_4(%arg0: i32) -> (i32, i32) {
    %c0_i32 = arith.constant 0 : i32
    %c0_i32_0 = arith.constant 0 : i32
    return %c0_i32, %arg0 : i32, i32
  }
  func.func @transform_5(%arg0: i32) -> (i32, i32) {
    %c0_i32 = arith.constant 0 : i32
    %c0_i32_0 = arith.constant 0 : i32
    return %c0_i32, %arg0 : i32, i32
  }
  func.func @transform_6(%arg0: i32) -> (i32, i32) {
    %c0_i32 = arith.constant 0 : i32
    %c0_i32_0 = arith.constant 0 : i32
    return %c0_i32, %arg0 : i32, i32
  }
}

</mosaic_0001>

<llo_original>
// kernel: tpu_custom_call.1
$region0: #{tpu_custom_call.1}
  #allocation0 [shape = 'u32[]', space=smem, size = 0x4, offset = 0x4, fixed_abs, tag = 'smem constant byte address 0x4 - core index']
  #allocation1 [shape = 'u32[144,128]{1,0:T(1,128)}', space=vmem, size = 0x12000, scoped, tag = 'internal scratch']
  #allocation2 [shape = 'f32[1]{0:T(128)S(6)}', space=smem, size = 0x200, scoped, tag = 'scoped memory for tpu_custom_call.1']
  %s0 = inlined_call_operand.<no memory space> [shape: f32[1], index: 0, kind: input, shape index: {}]
  %s1 = inlined_call_operand.vmem [shape: f32[4,1024], index: 1, kind: input, shape index: {}]
  %s2 = inlined_call_operand.hbm [shape: f32[1,1024], index: 2, kind: input, shape index: {}, may-alias: {2,5}]
  %s3 = inlined_call_operand.hbm [shape: f32[1,1024], index: 3, kind: input, shape index: {}, may-alias: {3,6}]
  %s4 = inlined_call_operand.hbm [shape: f32[4,1024], index: 4, kind: output, shape index: {0}]
  %s5 = inlined_call_operand.hbm [shape: f32[1,1024], index: 5, kind: output, shape index: {1}, may-alias: {2,5}]
  %s6 = inlined_call_operand.hbm [shape: f32[1,1024], index: 6, kind: output, shape index: {2}, may-alias: {3,6}]
  %7 = xla_tuple %s4, %s5, %s6
  %s8 = sld [smem:[#allocation0]]
  $region50: #{tpu_custom_call.1} parent=0
    _
  %s10 = ssub.s32 1, %s8
  %s11 = scalar_select 0, %s10, %s8
  %12 = sst [smem:[#allocation2]] %s0
  $region1: #{tpu_custom_call.1} parent=0
    #allocation3 [shape = 'u8[4096]{0}', space=vmem, size = 0x1000, scoped, tag = 'input window, operand 2, single buffered']
    #allocation4 [shape = 's32[1]{0}', space=sflag, size = 0x4, scoped, tag = 'scoped memory for tpu_custom_call.1']
    #allocation5 [shape = 's32[1]{0}', space=sflag, size = 0x4, scoped, tag = 'scoped memory for tpu_custom_call.1']
    #allocation6 [shape = 'u8[4096]{0}', space=vmem, size = 0x1000, scoped, tag = 'input window, operand 3, single buffered']
    #allocation7 [shape = 's32[1]{0}', space=sflag, size = 0x4, scoped, tag = 'scoped memory for tpu_custom_call.1']
    #allocation8 [shape = 'u8[16384]{0}', space=vmem, size = 0x4000, scoped, tag = 'output window, operand 0, single buffered']
    #allocation9 [shape = 'u8[4096]{0}', space=vmem, size = 0x1000, scoped, tag = 'output window, operand 1, single buffered']
    #allocation10 [shape = 's32[1]{0}', space=sflag, size = 0x4, scoped, tag = 'scoped memory for tpu_custom_call.1']
    #allocation11 [shape = 'u8[4096]{0}', space=vmem, size = 0x1000, scoped, tag = 'output window, operand 2, single buffered']
    %13 = vsyncpa [#allocation4], 0
    %14 = vsyncpa [#allocation7], 0
    %15 = vsyncpa [#allocation5], 0
    %16 = vsyncpa [#allocation10], 0
    // Predicated region
    $region2: #{tpu_custom_call.1} parent=1 // pred_check
      _
    $region3: #{tpu_custom_call.1} parent=1 // pred_check_branch
      %18 = sbr.rel (0) target = $region5
    $region4: #{tpu_custom_call.1} parent=1 // pred_region
      _
    $region5: #{tpu_custom_call.1} parent=1 // pred_fallthru
      _
    // Predicated region
    $region6: #{tpu_custom_call.1} parent=1 // pred_check
      _
    $region7: #{tpu_custom_call.1} parent=1 // pred_check_branch
      %20 = sbr.rel (0) target = $region9
    $region8: #{tpu_custom_call.1} parent=1 // pred_region
      _
    $region9: #{tpu_custom_call.1} parent=1 // pred_fallthru
      _
    // Predicated region
    $region10: #{tpu_custom_call.1} parent=1 // pred_check
      _
    $region11: #{tpu_custom_call.1} parent=1 // pred_check_branch
      %22 = sbr.rel (0) target = $region13
    $region12: #{tpu_custom_call.1} parent=1 // pred_region
      %s24 = ssub.s32 128, 128
      %25 = vsyncadd [#allocation4], %s24
      %s27 = sshll.u32 [#allocation3], 4
      %s28 = int_to_ptr.vmem [resolvable:$true] %s27
      %30 = dma.hbm_to_vmem [thread:$0]  %s2, 128, %s28, [#allocation4]
    $region13: #{tpu_custom_call.1} parent=1 // pred_fallthru
      _
    // Predicated region
    $region14: #{tpu_custom_call.1} parent=1 // pred_check
      _
    $region15: #{tpu_custom_call.1} parent=1 // pred_check_branch
      %32 = sbr.rel (0) target = $region17
    $region16: #{tpu_custom_call.1} parent=1 // pred_region
      %s34 = ssub.s32 128, 128
      %35 = vsyncadd [#allocation7], %s34
      %s37 = sshll.u32 [#allocation6], 4
      %s38 = int_to_ptr.vmem [resolvable:$true] %s37
      %40 = dma.hbm_to_vmem [thread:$0]  %s3, 128, %s38, [#allocation7]
    $region17: #{tpu_custom_call.1} parent=1 // pred_fallthru
      _
    // Predicated region
    $region18: #{tpu_custom_call.1} parent=1 // pred_check
      _
    $region19: #{tpu_custom_call.1} parent=1 // pred_check_branch
      %42 = sbr.rel (0) target = $region21
    $region20: #{tpu_custom_call.1} parent=1 // pred_region
      %43 = dma.done [#allocation4], 128
    $region21: #{tpu_custom_call.1} parent=1 // pred_fallthru
      _
    // Predicated region
    $region22: #{tpu_custom_call.1} parent=1 // pred_check
      _
    $region23: #{tpu_custom_call.1} parent=1 // pred_check_branch
      %45 = sbr.rel (0) target = $region25
    $region24: #{tpu_custom_call.1} parent=1 // pred_region
      %46 = dma.done [#allocation7], 128
    $region25: #{tpu_custom_call.1} parent=1 // pred_fallthru
      _
    %v47 = vld [vmem:[%s1] sm:$0xff]
    %v48 = vld [vmem:[%s1 + $0x8] sm:$0xff]
    %v49 = vld [vmem:[%s1 + $0x10] sm:$0xff]
    %v50 = vld [vmem:[%s1 + $0x18] sm:$0xff]
    %v51 = vld [vmem:[#allocation3] sm:$0xff]
    %v52 = vld [vmem:[#allocation6] sm:$0xff]
    %s53 = sld [smem:[#allocation2]]
    %s54 = smul.f32 %s53, 0.99
    %s55 = sadd.f32 %s54, 4.0
    %v60 = vcombine.high %v47, %v47
    %v61 = vcombine.high %v48, %v48
    %v62 = vcombine.high %v49, %v49
    %v63 = vcombine.high %v50, %v50
    %vm68 = vcmask 1043456
    %v69 = vsel %vm68, %v47, 0.0
    %v70 = vrot.slane %v69, 4
    %v71 = vadd.f32 %v69, %v70
    %v72 = vrot.slane %v71, 2
    %v73 = vadd.f32 %v71, %v72
    %v74 = vrot.slane %v73, 1
    %v75 = vadd.f32 %v73, %v74
    %v76 = vsel %vm68, %v60, 0.0
    %v77 = vrot.slane %v76, 4
    %v78 = vadd.f32 %v76, %v77
    %v79 = vrot.slane %v78, 2
    %v80 = vadd.f32 %v78, %v79
    %v81 = vrot.slane %v80, 1
    %v82 = vadd.f32 %v80, %v81
    %v83 = vsel %vm68, %v48, 0.0
    %v84 = vrot.slane %v83, 4
    %v85 = vadd.f32 %v83, %v84
    %v86 = vrot.slane %v85, 2
    %v87 = vadd.f32 %v85, %v86
    %v88 = vrot.slane %v87, 1
    %v89 = vadd.f32 %v87, %v88
    %v90 = vsel %vm68, %v61, 0.0
    %v91 = vrot.slane %v90, 4
    %v92 = vadd.f32 %v90, %v91
    %v93 = vrot.slane %v92, 2
    %v94 = vadd.f32 %v92, %v93
    %v95 = vrot.slane %v94, 1
    %v96 = vadd.f32 %v94, %v95
    %v97 = vsel %vm68, %v49, 0.0
    %v98 = vrot.slane %v97, 4
    %v99 = vadd.f32 %v97, %v98
    %v100 = vrot.slane %v99, 2
    %v101 = vadd.f32 %v99, %v100
    %v102 = vrot.slane %v101, 1
    %v103 = vadd.f32 %v101, %v102
    %v104 = vsel %vm68, %v62, 0.0
    %v105 = vrot.slane %v104, 4
    %v106 = vadd.f32 %v104, %v105
    %v107 = vrot.slane %v106, 2
    %v108 = vadd.f32 %v106, %v107
    %v109 = vrot.slane %v108, 1
    %v110 = vadd.f32 %v108, %v109
    %v111 = vsel %vm68, %v50, 0.0
    %v112 = vrot.slane %v111, 4
    %v113 = vadd.f32 %v111, %v112
    %v114 = vrot.slane %v113, 2
    %v115 = vadd.f32 %v113, %v114
    %v116 = vrot.slane %v115, 1
    %v117 = vadd.f32 %v115, %v116
    %v118 = vsel %vm68, %v63, 0.0
    %v119 = vrot.slane %v118, 4
    %v120 = vadd.f32 %v118, %v119
    %v121 = vrot.slane %v120, 2
    %v122 = vadd.f32 %v120, %v121
    %v123 = vrot.slane %v122, 1
    %v124 = vadd.f32 %v122, %v123
    %v125 = vrcp.pop 4.0
    %v126 = vmul.f32 %v75, %v125
    %v127 = vmul.f32 %v82, %v125
    %v128 = vmul.f32 %v89, %v125
    %v129 = vmul.f32 %v96, %v125
    %v130 = vmul.f32 %v103, %v125
    %v131 = vmul.f32 %v110, %v125
    %v132 = vmul.f32 %v117, %v125
    %v133 = vmul.f32 %v124, %v125
    %v142 = vcombine.low %v126, %v127
    %v143 = vcombine.low %v128, %v129
    %v144 = vcombine.low %v130, %v131
    %v145 = vcombine.low %v132, %v133
    %v150 = vsub.f32 %v47, %v142
    %v151 = vsub.f32 %v48, %v143
    %v152 = vsub.f32 %v49, %v144
    %v153 = vsub.f32 %v50, %v145
    %v154 = vmul.f32 %v150, %v150
    %v155 = vmul.f32 %v151, %v151
    %v156 = vmul.f32 %v152, %v152
    %v157 = vmul.f32 %v153, %v153
    %v162 = vcombine.high %v154, %v154
    %v163 = vcombine.high %v155, %v155
    %v164 = vcombine.high %v156, %v156
    %v165 = vcombine.high %v157, %v157
    %v170 = vsel %vm68, %v154, 0.0
    %v171 = vrot.slane %v170, 4
    %v172 = vadd.f32 %v170, %v171
    %v173 = vrot.slane %v172, 2
    %v174 = vadd.f32 %v172, %v173
    %v175 = vrot.slane %v174, 1
    %v176 = vadd.f32 %v174, %v175
    %v177 = vsel %vm68, %v162, 0.0
    %v178 = vrot.slane %v177, 4
    %v179 = vadd.f32 %v177, %v178
    %v180 = vrot.slane %v179, 2
    %v181 = vadd.f32 %v179, %v180
    %v182 = vrot.slane %v181, 1
    %v183 = vadd.f32 %v181, %v182
    %v184 = vsel %vm68, %v155, 0.0
    %v185 = vrot.slane %v184, 4
    %v186 = vadd.f32 %v184, %v185
    %v187 = vrot.slane %v186, 2
    %v188 = vadd.f32 %v186, %v187
    %v189 = vrot.slane %v188, 1
    %v190 = vadd.f32 %v188, %v189
    %v191 = vsel %vm68, %v163, 0.0
    %v192 = vrot.slane %v191, 4
    %v193 = vadd.f32 %v191, %v192
    %v194 = vrot.slane %v193, 2
    %v195 = vadd.f32 %v193, %v194
    %v196 = vrot.slane %v195, 1
    %v197 = vadd.f32 %v195, %v196
    %v198 = vsel %vm68, %v156, 0.0
    %v199 = vrot.slane %v198, 4
    %v200 = vadd.f32 %v198, %v199
    %v201 = vrot.slane %v200, 2
    %v202 = vadd.f32 %v200, %v201
    %v203 = vrot.slane %v202, 1
    %v204 = vadd.f32 %v202, %v203
    %v205 = vsel %vm68, %v164, 0.0
    %v206 = vrot.slane %v205, 4
    %v207 = vadd.f32 %v205, %v206
    %v208 = vrot.slane %v207, 2
    %v209 = vadd.f32 %v207, %v208
    %v210 = vrot.slane %v209, 1
    %v211 = vadd.f32 %v209, %v210
    %v212 = vsel %vm68, %v157, 0.0
    %v213 = vrot.slane %v212, 4
    %v214 = vadd.f32 %v212, %v213
    %v215 = vrot.slane %v214, 2
    %v216 = vadd.f32 %v214, %v215
    %v217 = vrot.slane %v216, 1
    %v218 = vadd.f32 %v216, %v217
    %v219 = vsel %vm68, %v165, 0.0
    %v220 = vrot.slane %v219, 4
    %v221 = vadd.f32 %v219, %v220
    %v222 = vrot.slane %v221, 2
    %v223 = vadd.f32 %v221, %v222
    %v224 = vrot.slane %v223, 1
    %v225 = vadd.f32 %v223, %v224
    %v227 = vlaneseq
    %v228 = vshrl.u32 %v227, 7
    %v229 = vsub.s32 0, %v228
    %v230 = vrot.slane %v51, %v229
    %v231 = vlaneseq
    %v232 = vshrl.u32 %v231, 7
    %v233 = vsub.s32 1, %v232
    %v234 = vrot.slane %v51, %v233
    %v235 = vlaneseq
    %v236 = vshrl.u32 %v235, 7
    %v237 = vsub.s32 2, %v236
    %v238 = vrot.slane %v51, %v237
    %v239 = vlaneseq
    %v240 = vshrl.u32 %v239, 7
    %v241 = vsub.s32 3, %v240
    %v242 = vrot.slane %v51, %v241
    %v243 = vlaneseq
    %v244 = vshrl.u32 %v243, 7
    %v245 = vsub.s32 4, %v244
    %v246 = vrot.slane %v51, %v245
    %v247 = vlaneseq
    %v248 = vshrl.u32 %v247, 7
    %v249 = vsub.s32 5, %v248
    %v250 = vrot.slane %v51, %v249
    %v251 = vlaneseq
    %v252 = vshrl.u32 %v251, 7
    %v253 = vsub.s32 6, %v252
    %v254 = vrot.slane %v51, %v253
    %v255 = vlaneseq
    %v256 = vshrl.u32 %v255, 7
    %v257 = vsub.s32 7, %v256
    %v258 = vrot.slane %v51, %v257
    %v267 = vsub.f32 %v126, %v230
    %v268 = vsub.f32 %v127, %v234
    %v269 = vsub.f32 %v128, %v238
    %v270 = vsub.f32 %v129, %v242
    %v271 = vsub.f32 %v130, %v246
    %v272 = vsub.f32 %v131, %v250
    %v273 = vsub.f32 %v132, %v254
    %v274 = vsub.f32 %v133, %v258
    %v275 = vstv %s55
    %v276 = vrcp.pop %v275
    %s277 = vtos %v276
    %s278 = smul.f32 4.0, %s277
    %v279 = vstv %s278
    %v280 = vmul.f32 %v267, %v279
    %v281 = vmul.f32 %v268, %v279
    %v282 = vmul.f32 %v269, %v279
    %v283 = vmul.f32 %v270, %v279
    %v284 = vmul.f32 %v271, %v279
    %v285 = vmul.f32 %v272, %v279
    %v286 = vmul.f32 %v273, %v279
    %v287 = vmul.f32 %v274, %v279
    %v296 = vcombine.low %v280, %v281
    %v297 = vcombine.low %v282, %v283
    %v298 = vcombine.low %v284, %v285
    %v299 = vcombine.low %v286, %v287
    %v301 = vunpack.c.l.s4 1966171168
    %v302 = vunpack.c.0.s8 %v301
    %v303 = vlaneseq
    %v304 = vshrl.u32 %v303, 7
    %v305 = vsub.s32 %v302, %v304
    %v306 = vrot.slane %v296, %v305
    %v308 = vunpack.c.l.s4 1966171168
    %v309 = vunpack.c.0.s8 %v308
    %v310 = vlaneseq
    %v311 = vshrl.u32 %v310, 7
    %v312 = vsub.s32 %v309, %v311
    %v313 = vrot.slane %v297, %v312
    %v315 = vunpack.c.l.s4 1966171168
    %v316 = vunpack.c.0.s8 %v315
    %v317 = vlaneseq
    %v318 = vshrl.u32 %v317, 7
    %v319 = vsub.s32 %v316, %v318
    %v320 = vrot.slane %v298, %v319
    %v322 = vunpack.c.l.s4 1966171168
    %v323 = vunpack.c.0.s8 %v322
    %v324 = vlaneseq
    %v325 = vshrl.u32 %v324, 7
    %v326 = vsub.s32 %v323, %v325
    %v327 = vrot.slane %v299, %v326
    %v328 = vcombine.low %v306, %v313
    %v329 = vcombine.low %v320, %v327
    %v331 = vunpack.c.l.s4 1966171168
    %v332 = vunpack.c.0.s8 %v331
    %v333 = vlaneseq
    %v334 = vshrl.u32 %v333, 7
    %v335 = vsub.s32 %v332, %v334
    %v336 = vrot.slane %v328, %v335
    %v338 = vunpack.c.l.s4 1966171168
    %v339 = vunpack.c.0.s8 %v338
    %v340 = vlaneseq
    %v341 = vshrl.u32 %v340, 7
    %v342 = vsub.s32 %v339, %v341
    %v343 = vrot.slane %v329, %v342
    %v344 = vcombine.low %v336, %v343
    %v346 = vadd.f32 %v51, %v344
    %v355 = vcombine.low %v176, %v183
    %v356 = vcombine.low %v190, %v197
    %v357 = vcombine.low %v204, %v211
    %v358 = vcombine.low %v218, %v225
    %v360 = vunpack.c.l.s4 1966171168
    %v361 = vunpack.c.0.s8 %v360
    %v362 = vlaneseq
    %v363 = vshrl.u32 %v362, 7
    %v364 = vsub.s32 %v361, %v363
    %v365 = vrot.slane %v355, %v364
    %v367 = vunpack.c.l.s4 1966171168
    %v368 = vunpack.c.0.s8 %v367
    %v369 = vlaneseq
    %v370 = vshrl.u32 %v369, 7
    %v371 = vsub.s32 %v368, %v370
    %v372 = vrot.slane %v356, %v371
    %v374 = vunpack.c.l.s4 1966171168
    %v375 = vunpack.c.0.s8 %v374
    %v376 = vlaneseq
    %v377 = vshrl.u32 %v376, 7
    %v378 = vsub.s32 %v375, %v377
    %v379 = vrot.slane %v357, %v378
    %v381 = vunpack.c.l.s4 1966171168
    %v382 = vunpack.c.0.s8 %v381
    %v383 = vlaneseq
    %v384 = vshrl.u32 %v383, 7
    %v385 = vsub.s32 %v382, %v384
    %v386 = vrot.slane %v358, %v385
    %v387 = vcombine.low %v365, %v372
    %v388 = vcombine.low %v379, %v386
    %v390 = vunpack.c.l.s4 1966171168
    %v391 = vunpack.c.0.s8 %v390
    %v392 = vlaneseq
    %v393 = vshrl.u32 %v392, 7
    %v394 = vsub.s32 %v391, %v393
    %v395 = vrot.slane %v387, %v394
    %v397 = vunpack.c.l.s4 1966171168
    %v398 = vunpack.c.0.s8 %v397
    %v399 = vlaneseq
    %v400 = vshrl.u32 %v399, 7
    %v401 = vsub.s32 %v398, %v400
    %v402 = vrot.slane %v388, %v401
    %v403 = vcombine.low %v395, %v402
    %v405 = vadd.f32 %v52, %v403
    %v406 = vmul.f32 %v267, %v267
    %v407 = vmul.f32 %v268, %v268
    %v408 = vmul.f32 %v269, %v269
    %v409 = vmul.f32 %v270, %v270
    %v410 = vmul.f32 %v271, %v271
    %v411 = vmul.f32 %v272, %v272
    %v412 = vmul.f32 %v273, %v273
    %v413 = vmul.f32 %v274, %v274
    %s414 = smul.f32 %s54, %s278
    %v415 = vstv %s414
    %v416 = vmul.f32 %v406, %v415
    %v417 = vmul.f32 %v407, %v415
    %v418 = vmul.f32 %v408, %v415
    %v419 = vmul.f32 %v409, %v415
    %v420 = vmul.f32 %v410, %v415
    %v421 = vmul.f32 %v411, %v415
    %v422 = vmul.f32 %v412, %v415
    %v423 = vmul.f32 %v413, %v415
    %v432 = vcombine.low %v416, %v417
    %v433 = vcombine.low %v418, %v419
    %v434 = vcombine.low %v420, %v421
    %v435 = vcombine.low %v422, %v423
    %v437 = vunpack.c.l.s4 1966171168
    %v438 = vunpack.c.0.s8 %v437
    %v439 = vlaneseq
    %v440 = vshrl.u32 %v439, 7
    %v441 = vsub.s32 %v438, %v440
    %v442 = vrot.slane %v432, %v441
    %v444 = vunpack.c.l.s4 1966171168
    %v445 = vunpack.c.0.s8 %v444
    %v446 = vlaneseq
    %v447 = vshrl.u32 %v446, 7
    %v448 = vsub.s32 %v445, %v447
    %v449 = vrot.slane %v433, %v448
    %v451 = vunpack.c.l.s4 1966171168
    %v452 = vunpack.c.0.s8 %v451
    %v453 = vlaneseq
    %v454 = vshrl.u32 %v453, 7
    %v455 = vsub.s32 %v452, %v454
    %v456 = vrot.slane %v434, %v455
    %v458 = vunpack.c.l.s4 1966171168
    %v459 = vunpack.c.0.s8 %v458
    %v460 = vlaneseq
    %v461 = vshrl.u32 %v460, 7
    %v462 = vsub.s32 %v459, %v461
    %v463 = vrot.slane %v435, %v462
    %v464 = vcombine.low %v442, %v449
    %v465 = vcombine.low %v456, %v463
    %v467 = vunpack.c.l.s4 1966171168
    %v468 = vunpack.c.0.s8 %v467
    %v469 = vlaneseq
    %v470 = vshrl.u32 %v469, 7
    %v471 = vsub.s32 %v468, %v470
    %v472 = vrot.slane %v464, %v471
    %v474 = vunpack.c.l.s4 1966171168
    %v475 = vunpack.c.0.s8 %v474
    %v476 = vlaneseq
    %v477 = vshrl.u32 %v476, 7
    %v478 = vsub.s32 %v475, %v477
    %v479 = vrot.slane %v465, %v478
    %v480 = vcombine.low %v472, %v479
    %v482 = vadd.f32 %v405, %v480
    %483 = vst [vmem:[#allocation9] sm:$0xff] %v346
    %484 = vst [vmem:[#allocation11] sm:$0xff] %v482
    %v485 = vstv %s55
    %v486 = vrcp.pop %v485
    %s487 = vtos %v486
    %v488 = vstv %s487
    %v489 = vmul.f32 %v482, %v488
    %v490 = vrsqrt.pop %v489
    %v491 = vmul.f32 %v489, %v490
    %vm492 = vcmp.eq.f32.partialorder %v489, inf
    %v493 = vsel %vm492, %v489, %v491
    %vm494 = vcmp.eq.f32.partialorder %v489, 0.0
    %v495 = vand.u32 %v489, 2147483648
    %v496 = vsel %vm494, %v495, %v493
    %v497 = vadd.f32 %v496, 1e-05
    %v498 = vrcp.pop %v497
    %v499 = vmul.f32 %v346, %v498
    %v501 = vlaneseq
    %v502 = vshrl.u32 %v501, 7
    %v503 = vsub.s32 0, %v502
    %v504 = vrot.slane %v499, %v503
    %v505 = vlaneseq
    %v506 = vshrl.u32 %v505, 7
    %v507 = vsub.s32 1, %v506
    %v508 = vrot.slane %v499, %v507
    %v509 = vlaneseq
    %v510 = vshrl.u32 %v509, 7
    %v511 = vsub.s32 2, %v510
    %v512 = vrot.slane %v499, %v511
    %v513 = vlaneseq
    %v514 = vshrl.u32 %v513, 7
    %v515 = vsub.s32 3, %v514
    %v516 = vrot.slane %v499, %v515
    %v517 = vlaneseq
    %v518 = vshrl.u32 %v517, 7
    %v519 = vsub.s32 4, %v518
    %v520 = vrot.slane %v499, %v519
    %v521 = vlaneseq
    %v522 = vshrl.u32 %v521, 7
    %v523 = vsub.s32 5, %v522
    %v524 = vrot.slane %v499, %v523
    %v525 = vlaneseq
    %v526 = vshrl.u32 %v525, 7
    %v527 = vsub.s32 6, %v526
    %v528 = vrot.slane %v499, %v527
    %v529 = vlaneseq
    %v530 = vshrl.u32 %v529, 7
    %v531 = vsub.s32 7, %v530
    %v532 = vrot.slane %v499, %v531
    %v533 = vcombine.low %v504, %v508
    %v534 = vcombine.low %v512, %v516
    %v535 = vcombine.low %v520, %v524
    %v536 = vcombine.low %v528, %v532
    %v541 = vsub.f32 %v47, %v533
    %v542 = vsub.f32 %v48, %v534
    %v543 = vsub.f32 %v49, %v535
    %v544 = vsub.f32 %v50, %v536
    %545 = vst [vmem:[#allocation8] sm:$0xff] %v541
    %546 = vst [vmem:[#allocation8 + $0x8] sm:$0xff] %v542
    %547 = vst [vmem:[#allocation8 + $0x10] sm:$0xff] %v543
    %548 = vst [vmem:[#allocation8 + $0x18] sm:$0xff] %v544
    // Predicated region
    $region26: #{tpu_custom_call.1} parent=1 // pred_check
      _
    $region27: #{tpu_custom_call.1} parent=1 // pred_check_branch
      %550 = sbr.rel (0) target = $region29
    $region28: #{tpu_custom_call.1} parent=1 // pred_region
      %s552 = ssub.s32 512, 512
      %553 = vsyncadd [#allocation5], %s552
      %s555 = sshll.u32 [#allocation8], 4
      %s556 = int_to_ptr.vmem [resolvable:$true] %s555
      %558 = dma.vmem_to_hbm [thread:$0]  %s556, 512, %s4, [#allocation5]
    $region29: #{tpu_custom_call.1} parent=1 // pred_fallthru
      _
    // Predicated region
    $region30: #{tpu_custom_call.1} parent=1 // pred_check
      _
    $region31: #{tpu_custom_call.1} parent=1 // pred_check_branch
      %560 = sbr.rel (0) target = $region33
    $region32: #{tpu_custom_call.1} parent=1 // pred_region
      %s562 = ssub.s32 128, 128
      %563 = vsyncadd [#allocation10], %s562
      %s565 = sshll.u32 [#allocation9], 4
      %s566 = int_to_ptr.vmem [resolvable:$true] %s565
      %568 = dma.vmem_to_hbm [thread:$0]  %s566, 128, %s5, [#allocation10]
    $region33: #{tpu_custom_call.1} parent=1 // pred_fallthru
      _
    // Predicated region
    $region34: #{tpu_custom_call.1} parent=1 // pred_check
      _
    $region35: #{tpu_custom_call.1} parent=1 // pred_check_branch
      %570 = sbr.rel (0) target = $region37
    $region36: #{tpu_custom_call.1} parent=1 // pred_region
      %s572 = ssub.s32 128, 128
      %573 = vsyncadd [#allocation10], %s572
      %s575 = sshll.u32 [#allocation11], 4
      %s576 = int_to_ptr.vmem [resolvable:$true] %s575
      %578 = dma.vmem_to_hbm [thread:$0]  %s576, 128, %s6, [#allocation10]
    $region37: #{tpu_custom_call.1} parent=1 // pred_fallthru
      _
    // Predicated region
    $region38: #{tpu_custom_call.1} parent=1 // pred_check
      _
    $region39: #{tpu_custom_call.1} parent=1 // pred_check_branch
      %580 = sbr.rel (0) target = $region41
    $region40: #{tpu_custom_call.1} parent=1 // pred_region
      %581 = dma.done [#allocation5], 512
    $region41: #{tpu_custom_call.1} parent=1 // pred_fallthru
      _
    // Predicated region
    $region42: #{tpu_custom_call.1} parent=1 // pred_check
      _
    $region43: #{tpu_custom_call.1} parent=1 // pred_check_branch
      %583 = sbr.rel (0) target = $region45
    $region44: #{tpu_custom_call.1} parent=1 // pred_region
      %584 = dma.done [#allocation10], 128
    $region45: #{tpu_custom_call.1} parent=1 // pred_fallthru
      _
    // Predicated region
    $region46: #{tpu_custom_call.1} parent=1 // pred_check
      _
    $region47: #{tpu_custom_call.1} parent=1 // pred_check_branch
      %586 = sbr.rel (0) target = $region49
    $region48: #{tpu_custom_call.1} parent=1 // pred_region
      %587 = dma.done [#allocation10], 128
    $region49: #{tpu_custom_call.1} parent=1 // pred_fallthru
      _
    %588 = vsyncpa [#allocation4], 1
    %589 = vsyncpa [#allocation7], 1
    %590 = vsyncpa [#allocation5], 1
    %591 = vsyncpa [#allocation10], 1

</llo_original>
